<compile_context>
chip_gen: v6e
topology: v6e:2x2x1
jax: 0.10.0
libtpu: 0.0.40
codegen_flags: <defaults>
</compile_context>

<pallas_src>
import jax
import jax.numpy as jnp
import numpy as np
from jax.experimental import pallas as pl
from jax.experimental.pallas import tpu as pltpu


def _round_up(x, m):
    return (x + m - 1) // m * m


# ---------------------------------------------------------------------------
# Kernel
# ---------------------------------------------------------------------------
def critic_kernel(x_ref, wx_ref, b1_ref, w2h_ref, b2_ref, w3_ref, b3_ref, o_ref):
    """One batch tile of the Critic forward pass.

    x_ref  : (TM, P)          bf16   [state | action | zero pad]
    wx_ref : (P, H1p + H2p)   bf16   [W1^T (padded) | W2_action^T (padded)]
    b1_ref : (1, H1p)         f32
    w2h_ref: (H1p, H2p)       bf16   W2_hidden^T (padded)
    b2_ref : (1, H2p)         f32
    w3_ref : (1, H2p)         f32    fc3 weight row (padded)
    b3_ref : (1, 1)           f32
    o_ref  : (TM, 1)          f32
    """
    h1p = b1_ref.shape[1]

    x = x_ref[...]
    # Fused MXU matmul: x @ [W1 | W2_action] -> (TM, H1p+H2p), f32 accumulate.
    xw = jnp.dot(x, wx_ref[...], preferred_element_type=jnp.float32)

    # fc1 + relu (padded lanes of h1 are exactly zero).
    h1 = jnp.maximum(xw[:, :h1p] + b1_ref[...], 0.0)

    # fc2 + relu: hidden branch on the MXU; action branch already in xw.
    h2 = jnp.dot(h1.astype(jnp.bfloat16), w2h_ref[...],
                 preferred_element_type=jnp.float32)
    h2 = jnp.maximum(h2 + xw[:, h1p:] + b2_ref[...], 0.0)

    # fc3: output width 1 -> VPU multiply + lane reduction, skip the MXU.
    o_ref[...] = (jnp.sum(h2 * w3_ref[...], axis=-1, keepdims=True)
                  + b3_ref[...])


# ---------------------------------------------------------------------------
# Wrapper
# ---------------------------------------------------------------------------
def prepare_critic_params(params, state_dim, action_dim):
    """One-time weight re-layout: transpose, split the concat, zero-pad lane
    dims to multiples of 128, fuse fc1 with fc2's action branch, cast matmul
    weights to bf16.  Call once and reuse on every forward."""
    w1, b1, w2, b2, w3, b3 = params
    h1 = w1.shape[0]
    h2 = w2.shape[0]
    S, A = state_dim, action_dim

    P = _round_up(S + A, 128)
    H1p = _round_up(h1, 128)
    H2p = _round_up(h2, 128)

    # fc1 weight laid out (P, H1p): only the state rows are non-zero.
    w1_p = jnp.zeros((P, H1p), jnp.float32).at[:S, :h1].set(w1.T)
    # action branch of fc2 laid out (P, H2p): only the action rows non-zero.
    w2a_p = jnp.zeros((P, H2p), jnp.float32).at[S:S + A, :h2].set(w2[:, h1:].T)
    # Fuse both x-consuming matmuls into one (P, H1p + H2p) bf16 weight.
    wx = jnp.concatenate([w1_p, w2a_p], axis=1).astype(jnp.bfloat16)

    w2h = (jnp.zeros((H1p, H2p), jnp.float32)
           .at[:h1, :h2].set(w2[:, :h1].T).astype(jnp.bfloat16))

    b1_p = jnp.zeros((1, H1p), jnp.float32).at[0, :h1].set(b1)
    b2_p = jnp.zeros((1, H2p), jnp.float32).at[0, :h2].set(b2)
    w3_p = jnp.zeros((1, H2p), jnp.float32).at[0, :h2].set(w3[0])
    b3_p = jnp.asarray(b3, jnp.float32).reshape(1, 1)
    return (wx, b1_p, w2h, b2_p, w3_p, b3_p)


def critic_forward(state, action, prepared, *, tm=512):
    """state: (B, S) f32, action: (B, A) f32 -> (B, 1) f32."""
    wx, b1, w2h, b2, w3, b3 = prepared
    B = state.shape[0]
    SA = state.shape[1] + action.shape[1]
    P = wx.shape[0]
    H1p = b1.shape[1]
    H2p = b2.shape[1]

    # Batch tile: multiple of 8 sublanes, capped by the (rounded-up) batch.
    tm_eff = min(tm, _round_up(B, 8))
    Bp = _round_up(B, tm_eff)

    # Lane-dense, zero-padded [state | action] block; bf16 for the MXU.
    x = jnp.concatenate([state, action], axis=1)
    x = jnp.pad(x, ((0, Bp - B), (0, P - SA))).astype(jnp.bfloat16)

    resident = lambda i: (0, 0)  # weights/biases: same block every grid step
    out = pl.pallas_call(
        critic_kernel,
        out_shape=jax.ShapeDtypeStruct((Bp, 1), jnp.float32),
        grid=(Bp // tm_eff,),
        in_specs=[
            pl.BlockSpec((tm_eff, P), lambda i: (i, 0)),    # x tile (streamed)
            pl.BlockSpec((P, H1p + H2p), resident),         # fused x-weight
            pl.BlockSpec((1, H1p), resident),               # b1
            pl.BlockSpec((H1p, H2p), resident),             # W2 hidden branch
            pl.BlockSpec((1, H2p), resident),               # b2
            pl.BlockSpec((1, H2p), resident),               # fc3 weight row
            pl.BlockSpec((1, 1), resident),                 # fc3 bias
        ],
        out_specs=pl.BlockSpec((tm_eff, 1), lambda i: (i, 0)),
        compiler_params=pltpu.CompilerParams(
            dimension_semantics=("parallel",),   # megacore split on v7x
            vmem_limit_bytes=32 * 1024 * 1024,   # safe on v5e/v6e/v7x
        ),
    )(x, wx, b1, w2h, b2, w3, b3)
    return out[:B]


# ---------------------------------------------------------------------------
# Init (matches the PyTorch module) + pure-JAX reference
# ---------------------------------------------------------------------------
def fanin_init(key, shape, fanin=None):
    fanin = fanin or shape[0]
    v = 1.0 / np.sqrt(fanin)
    return jax.random.uniform(key, shape, jnp.float32, -v, v)


def init_critic_params(key, state_dim, action_dim, hidden1=256, hidden2=256,
                       init_w=3e-3):
    k = jax.random.split(key, 6)
    # nn.Linear(in, out): weight (out, in), bias (out,)
    w1 = fanin_init(k[0], (hidden1, state_dim))          # fanin_init(weight.size())
    b1 = jax.random.uniform(k[1], (hidden1,), jnp.float32,
                            -1.0 / np.sqrt(state_dim), 1.0 / np.sqrt(state_dim))
    w2 = fanin_init(k[2], (hidden2, hidden1 + action_dim))
    b2 = jax.random.uniform(k[3], (hidden2,), jnp.float32,
                            -1.0 / np.sqrt(hidden1 + action_dim),
                            1.0 / np.sqrt(hidden1 + action_dim))
    w3 = jax.random.uniform(k[4], (1, hidden2), jnp.float32, -init_w, init_w)
    b3 = jax.random.uniform(k[5], (1,), jnp.float32,
                            -1.0 / np.sqrt(hidden2), 1.0 / np.sqrt(hidden2))
    return (w1, b1, w2, b2, w3, b3)


def critic_ref(state, action, params):
    w1, b1, w2, b2, w3, b3 = params
    h1 = jnp.maximum(state @ w1.T + b1, 0.0)
    h2 = jnp.maximum(jnp.concatenate([h1, action], axis=1) @ w2.T + b2, 0.0)
    return h2 @ w3.T + b3


if __name__ == "__main__":
    # Small shapes; hidden sizes are the module defaults (256, 256).
    B, state_dim, action_dim = 8, 16, 4
    hidden1, hidden2 = 256, 256

    key = jax.random.PRNGKey(0)
    kp, ks, ka = jax.random.split(key, 3)

    params = init_critic_params(kp, state_dim, action_dim, hidden1, hidden2)
    state = jax.random.normal(ks, (B, state_dim), jnp.float32)
    action = jax.random.normal(ka, (B, action_dim), jnp.float32)

    prepared = prepare_critic_params(params, state_dim, action_dim)

    out = critic_forward(state, action, prepared)
    out = jax.block_until_ready(out)

    ref = critic_ref(state, action, params)
    assert out.shape == (B, 1), out.shape
    # Kernel uses bf16 MXU operands with f32 accumulation -> tolerance loosened
    # slightly vs. the pure-f32 reference.
    np.testing.assert_allclose(np.asarray(out), np.asarray(ref),
                               rtol=2e-2, atol=2e-3)
    print("KERNEL_OK")
</pallas_src>

<mosaic_0001>
module attributes {stable_mosaic.version = 11 : i64} {
  func.func @critic_kernel(%arg0: i32, %arg1: memref<8x128xbf16, #tpu.memory_space<vmem>>, %arg2: memref<128x512xbf16, #tpu.memory_space<vmem>>, %arg3: memref<1x256xf32, #tpu.memory_space<vmem>>, %arg4: memref<256x256xbf16, #tpu.memory_space<vmem>>, %arg5: memref<1x256xf32, #tpu.memory_space<vmem>>, %arg6: memref<1x256xf32, #tpu.memory_space<vmem>>, %arg7: memref<1x1xf32, #tpu.memory_space<vmem>>, %arg8: memref<8x1xf32, #tpu.memory_space<vmem>>) attributes {dimension_semantics = [#tpu.dimension_semantics<parallel>], iteration_bounds = array<i64: 1>, scalar_prefetch = 0 : i64, scratch_operands = 0 : i64, tpu.core_type = #tpu.core_type<tc>, window_params = [{transform_indices = @transform_0, window_bounds = array<i64: 8, 128>}, {pipeline_mode = #tpu.pipeline_mode<synchronous>, transform_indices = @transform_1, window_bounds = array<i64: 128, 512>}, {pipeline_mode = #tpu.pipeline_mode<synchronous>, transform_indices = @transform_2, window_bounds = array<i64: 1, 256>}, {pipeline_mode = #tpu.pipeline_mode<synchronous>, transform_indices = @transform_3, window_bounds = array<i64: 256, 256>}, {pipeline_mode = #tpu.pipeline_mode<synchronous>, transform_indices = @transform_4, window_bounds = array<i64: 1, 256>}, {pipeline_mode = #tpu.pipeline_mode<synchronous>, transform_indices = @transform_5, window_bounds = array<i64: 1, 256>}, {pipeline_mode = #tpu.pipeline_mode<synchronous>, transform_indices = @transform_6, window_bounds = array<i64: 1, 1>}, {transform_indices = @transform_7, window_bounds = array<i64: 8, 1>}]} {
    %c0 = arith.constant 0 : index
    %c0_0 = arith.constant 0 : index
    %0 = vector.load %arg1[%c0, %c0_0] : memref<8x128xbf16, #tpu.memory_space<vmem>>, vector<8x128xbf16>
    %c0_1 = arith.constant 0 : index
    %c0_2 = arith.constant 0 : index
    %1 = vector.load %arg2[%c0_1, %c0_2] : memref<128x512xbf16, #tpu.memory_space<vmem>>, vector<128x512xbf16>
    %cst = arith.constant dense<0.000000e+00> : vector<8x512xf32>
    %2 = tpu.matmul %0, %1, %cst {dimension_numbers = #tpu.dot_dimension_numbers<[1], [0], [0], [1], [0, 0, 1, 1], [], []>} : vector<8x128xbf16>, vector<128x512xbf16>, vector<8x512xf32> -> vector<8x512xf32>
    %3 = vector.extract_strided_slice %2 {offsets = [0, 0], sizes = [8, 256], strides = [1, 1]} : vector<8x512xf32> to vector<8x256xf32>
    %c0_3 = arith.constant 0 : index
    %c0_4 = arith.constant 0 : index
    %4 = vector.load %arg3[%c0_3, %c0_4] : memref<1x256xf32, #tpu.memory_space<vmem>>, vector<1x256xf32>
    %5 = vector.broadcast %4 : vector<1x256xf32> to vector<8x256xf32>
    %6 = arith.addf %3, %5 : vector<8x256xf32>
    %cst_5 = arith.constant 0.000000e+00 : f32
    %7 = vector.broadcast %cst_5 : f32 to vector<8x256xf32>
    %8 = arith.maximumf %6, %7 : vector<8x256xf32>
    %9 = arith.truncf %8 : vector<8x256xf32> to vector<8x256xbf16>
    %c0_6 = arith.constant 0 : index
    %c0_7 = arith.constant 0 : index
    %10 = vector.load %arg4[%c0_6, %c0_7] : memref<256x256xbf16, #tpu.memory_space<vmem>>, vector<256x256xbf16>
    %cst_8 = arith.constant dense<0.000000e+00> : vector<8x256xf32>
    %11 = tpu.matmul %9, %10, %cst_8 {dimension_numbers = #tpu.dot_dimension_numbers<[1], [0], [0], [1], [0, 0, 1, 1], [], []>} : vector<8x256xbf16>, vector<256x256xbf16>, vector<8x256xf32> -> vector<8x256xf32>
    %12 = vector.extract_strided_slice %2 {offsets = [0, 256], sizes = [8, 256], strides = [1, 1]} : vector<8x512xf32> to vector<8x256xf32>
    %13 = arith.addf %11, %12 : vector<8x256xf32>
    %c0_9 = arith.constant 0 : index
    %c0_10 = arith.constant 0 : index
    %14 = vector.load %arg5[%c0_9, %c0_10] : memref<1x256xf32, #tpu.memory_space<vmem>>, vector<1x256xf32>
    %15 = vector.broadcast %14 : vector<1x256xf32> to vector<8x256xf32>
    %16 = arith.addf %13, %15 : vector<8x256xf32>
    %cst_11 = arith.constant 0.000000e+00 : f32
    %17 = vector.broadcast %cst_11 : f32 to vector<8x256xf32>
    %18 = arith.maximumf %16, %17 : vector<8x256xf32>
    %c0_12 = arith.constant 0 : index
    %c0_13 = arith.constant 0 : index
    %19 = vector.load %arg6[%c0_12, %c0_13] : memref<1x256xf32, #tpu.memory_space<vmem>>, vector<1x256xf32>
    %20 = vector.broadcast %19 : vector<1x256xf32> to vector<8x256xf32>
    %21 = arith.mulf %18, %20 : vector<8x256xf32>
    %cst_14 = arith.constant dense<0.000000e+00> : vector<8xf32>
    %22 = vector.multi_reduction <add>, %21, %cst_14 [1] : vector<8x256xf32> to vector<8xf32>
    %23 = vector.shape_cast %22 : vector<8xf32> to vector<8x1xf32>
    %c0_15 = arith.constant 0 : index
    %c0_16 = arith.constant 0 : index
    %24 = vector.load %arg7[%c0_15, %c0_16] : memref<1x1xf32, #tpu.memory_space<vmem>>, vector<1x1xf32>
    %25 = vector.broadcast %24 : vector<1x1xf32> to vector<8x1xf32>
    %26 = arith.addf %23, %25 : vector<8x1xf32>
    %c0_17 = arith.constant 0 : index
    %c0_18 = arith.constant 0 : index
    %27 = vector.load %arg8[%c0_17, %c0_18] : memref<8x1xf32, #tpu.memory_space<vmem>>, vector<8x1xf32>
    tpu.vector_store %arg8[%c0_17, %c0_18], %26 {strides = array<i32>} : memref<8x1xf32, #tpu.memory_space<vmem>>, vector<8x1xf32>,
    return
  }
  func.func @transform_0(%arg0: i32) -> (i32, i32) {
    %c0_i32 = arith.constant 0 : i32
    %c0_i32_0 = arith.constant 0 : i32
    return %arg0, %c0_i32 : i32, i32
  }
  func.func @transform_1(%arg0: i32) -> (i32, i32) {
    %c0_i32 = arith.constant 0 : i32
    %c0_i32_0 = arith.constant 0 : i32
    %c0_i32_1 = arith.constant 0 : i32
    return %c0_i32, %c0_i32_0 : i32, i32
  }
  func.func @transform_2(%arg0: i32) -> (i32, i32) {
    %c0_i32 = arith.constant 0 : i32
    %c0_i32_0 = arith.constant 0 : i32
    %c0_i32_1 = arith.constant 0 : i32
    return %c0_i32, %c0_i32_0 : i32, i32
  }
  func.func @transform_3(%arg0: i32) -> (i32, i32) {
    %c0_i32 = arith.constant 0 : i32
    %c0_i32_0 = arith.constant 0 : i32
    %c0_i32_1 = arith.constant 0 : i32
    return %c0_i32, %c0_i32_0 : i32, i32
  }
  func.func @transform_4(%arg0: i32) -> (i32, i32) {
    %c0_i32 = arith.constant 0 : i32
    %c0_i32_0 = arith.constant 0 : i32
    %c0_i32_1 = arith.constant 0 : i32
    return %c0_i32, %c0_i32_0 : i32, i32
  }
  func.func @transform_5(%arg0: i32) -> (i32, i32) {
    %c0_i32 = arith.constant 0 : i32
    %c0_i32_0 = arith.constant 0 : i32
    %c0_i32_1 = arith.constant 0 : i32
    return %c0_i32, %c0_i32_0 : i32, i32
  }
  func.func @transform_6(%arg0: i32) -> (i32, i32) {
    %c0_i32 = arith.constant 0 : i32
    %c0_i32_0 = arith.constant 0 : i32
    %c0_i32_1 = arith.constant 0 : i32
    return %c0_i32, %c0_i32_0 : i32, i32
  }
  func.func @transform_7(%arg0: i32) -> (i32, i32) {
    %c0_i32 = arith.constant 0 : i32
    %c0_i32_0 = arith.constant 0 : i32
    return %arg0, %c0_i32 : i32, i32
  }
}

</mosaic_0001>

<llo_original>
// kernel: tpu_custom_call.1
$region0: #{tpu_custom_call.1}
  #allocation0 [shape = 'u32[]', space=smem, size = 0x4, offset = 0x4, fixed_abs, tag = 'smem constant byte address 0x4 - core index']
  #allocation1 [shape = 'u32[144,128]{1,0:T(1,128)}', space=vmem, size = 0x12000, scoped, tag = 'internal scratch']
  #allocation2 [shape = 'f32[1,1]{1,0:T(1,128)S(1)}', space=vmem, size = 0x200, scoped, tag = 'scoped memory for tpu_custom_call.1']
  %s0 = inlined_call_operand.hbm [shape: bf16[8,128], index: 0, kind: input, shape index: {}]
  %s1 = inlined_call_operand.hbm [shape: bf16[128,512], index: 1, kind: input, shape index: {}]
  %s2 = inlined_call_operand.vmem [shape: f32[1,256], index: 2, kind: input, shape index: {}]
  %s3 = inlined_call_operand.hbm [shape: bf16[256,256], index: 3, kind: input, shape index: {}]
  %s4 = inlined_call_operand.vmem [shape: f32[1,256], index: 4, kind: input, shape index: {}]
  %s5 = inlined_call_operand.vmem [shape: f32[1,256], index: 5, kind: input, shape index: {}]
  %s6 = inlined_call_operand.<no memory space> [shape: f32[1,1], index: 6, kind: input, shape index: {}]
  %s7 = inlined_call_operand.vmem [shape: f32[8,1], index: 7, kind: output, shape index: {}]
  %s8 = sld [smem:[#allocation0]]
  $region50: #{tpu_custom_call.1} parent=0
    _
  %s10 = ssub.s32 1, %s8
  %s11 = scalar_select 0, %s10, %s8
  %v12 = vstv %s6
  %13 = vst [vmem:[#allocation2] sm:$0x1] %v12
  $region1: #{tpu_custom_call.1} parent=0
    #allocation3 [shape = 'u8[2048]{0}', space=vmem, size = 0x800, scoped, tag = 'input window, operand 0, single buffered']
    #allocation4 [shape = 's32[1]{0}', space=sflag, size = 0x4, scoped, tag = 'scoped memory for tpu_custom_call.1']
    #allocation5 [shape = 'u8[131072]{0}', space=vmem, size = 0x20000, scoped, tag = 'input window, operand 1, single buffered']
    #allocation6 [shape = 's32[1]{0}', space=sflag, size = 0x4, scoped, tag = 'scoped memory for tpu_custom_call.1']
    #allocation7 [shape = 'u8[131072]{0}', space=vmem, size = 0x20000, scoped, tag = 'input window, operand 3, single buffered']
    %14 = vsyncpa [#allocation4], 0
    %15 = vsyncpa [#allocation6], 0
    // Predicated region
    $region2: #{tpu_custom_call.1} parent=1 // pred_check
      _
    $region3: #{tpu_custom_call.1} parent=1 // pred_check_branch
      %17 = sbr.rel (0) target = $region5
    $region4: #{tpu_custom_call.1} parent=1 // pred_region
      %s19 = ssub.s32 64, 64
      %20 = vsyncadd [#allocation4], %s19
      %s22 = sshll.u32 [#allocation3], 4
      %s23 = int_to_ptr.vmem [resolvable:$true] %s22
      %25 = dma.hbm_to_vmem [thread:$0]  %s0, 64, %s23, [#allocation4]
    $region5: #{tpu_custom_call.1} parent=1 // pred_fallthru
      _
    // Predicated region
    $region6: #{tpu_custom_call.1} parent=1 // pred_check
      _
    $region7: #{tpu_custom_call.1} parent=1 // pred_check_branch
      %27 = sbr.rel (0) target = $region9
    $region8: #{tpu_custom_call.1} parent=1 // pred_region
      %s29 = ssub.s32 4096, 4096
      %30 = vsyncadd [#allocation6], %s29
      %s31 = sshll.u32 [#allocation5], 4
      %s32 = int_to_ptr.vmem [resolvable:$true] %s31
      %37 = dma.hbm_to_vmem [thread:$0]  %s1, 4096, %s32, [#allocation6], 256, 256, 16
    $region9: #{tpu_custom_call.1} parent=1 // pred_fallthru
      _
    // Predicated region
    $region10: #{tpu_custom_call.1} parent=1 // pred_check
      _
    $region11: #{tpu_custom_call.1} parent=1 // pred_check_branch
      %39 = sbr.rel (0) target = $region13
    $region12: #{tpu_custom_call.1} parent=1 // pred_region
      _
    $region13: #{tpu_custom_call.1} parent=1 // pred_fallthru
      _
    // Predicated region
    $region14: #{tpu_custom_call.1} parent=1 // pred_check
      _
    $region15: #{tpu_custom_call.1} parent=1 // pred_check_branch
      %41 = sbr.rel (0) target = $region17
    $region16: #{tpu_custom_call.1} parent=1 // pred_region
      %s43 = ssub.s32 4096, 4096
      %44 = vsyncadd [#allocation6], %s43
      %s45 = sshll.u32 [#allocation7], 4
      %s46 = int_to_ptr.vmem [resolvable:$true] %s45
      %51 = dma.hbm_to_vmem [thread:$0]  %s3, 4096, %s46, [#allocation6], 128, 128, 8
    $region17: #{tpu_custom_call.1} parent=1 // pred_fallthru
      _
    // Predicated region
    $region18: #{tpu_custom_call.1} parent=1 // pred_check
      _
    $region19: #{tpu_custom_call.1} parent=1 // pred_check_branch
      %53 = sbr.rel (0) target = $region21
    $region20: #{tpu_custom_call.1} parent=1 // pred_region
      _
    $region21: #{tpu_custom_call.1} parent=1 // pred_fallthru
      _
    // Predicated region
    $region22: #{tpu_custom_call.1} parent=1 // pred_check
      _
    $region23: #{tpu_custom_call.1} parent=1 // pred_check_branch
      %55 = sbr.rel (0) target = $region25
    $region24: #{tpu_custom_call.1} parent=1 // pred_region
      _
    $region25: #{tpu_custom_call.1} parent=1 // pred_fallthru
      _
    // Predicated region
    $region26: #{tpu_custom_call.1} parent=1 // pred_check
      _
    $region27: #{tpu_custom_call.1} parent=1 // pred_check_branch
      %57 = sbr.rel (0) target = $region29
    $region28: #{tpu_custom_call.1} parent=1 // pred_region
      _
    $region29: #{tpu_custom_call.1} parent=1 // pred_fallthru
      _
    // Predicated region
    $region30: #{tpu_custom_call.1} parent=1 // pred_check
      _
    $region31: #{tpu_custom_call.1} parent=1 // pred_check_branch
      %59 = sbr.rel (0) target = $region33
    $region32: #{tpu_custom_call.1} parent=1 // pred_region
      %60 = dma.done [#allocation4], 64
    $region33: #{tpu_custom_call.1} parent=1 // pred_fallthru
      _
    // Predicated region
    $region34: #{tpu_custom_call.1} parent=1 // pred_check
      _
    $region35: #{tpu_custom_call.1} parent=1 // pred_check_branch
      %62 = sbr.rel (0) target = $region37
    $region36: #{tpu_custom_call.1} parent=1 // pred_region
      %63 = dma.done [#allocation6], 4096
    $region37: #{tpu_custom_call.1} parent=1 // pred_fallthru
      _
    // Predicated region
    $region38: #{tpu_custom_call.1} parent=1 // pred_check
      _
    $region39: #{tpu_custom_call.1} parent=1 // pred_check_branch
      %65 = sbr.rel (0) target = $region41
    $region40: #{tpu_custom_call.1} parent=1 // pred_region
      %66 = dma.done [#allocation6], 4096
    $region41: #{tpu_custom_call.1} parent=1 // pred_fallthru
      _
    %v68 = vld [vmem:[#allocation3] sm:$0xf]
    %v69 = vld [vmem:[#allocation5] sm:$0xff]
    %v70 = vld [vmem:[#allocation5 + $0x8] sm:$0xff]
    %v71 = vld [vmem:[#allocation5 + $0x10] sm:$0xff]
    %v72 = vld [vmem:[#allocation5 + $0x18] sm:$0xff]
    %v73 = vld [vmem:[#allocation5 + $0x20] sm:$0xff]
    %v74 = vld [vmem:[#allocation5 + $0x28] sm:$0xff]
    %v75 = vld [vmem:[#allocation5 + $0x30] sm:$0xff]
    %v76 = vld [vmem:[#allocation5 + $0x38] sm:$0xff]
    %v77 = vld [vmem:[#allocation5 + $0x40] sm:$0xff]
    %v78 = vld [vmem:[#allocation5 + $0x48] sm:$0xff]
    %v79 = vld [vmem:[#allocation5 + $0x50] sm:$0xff]
    %v80 = vld [vmem:[#allocation5 + $0x58] sm:$0xff]
    %v81 = vld [vmem:[#allocation5 + $0x60] sm:$0xff]
    %v82 = vld [vmem:[#allocation5 + $0x68] sm:$0xff]
    %v83 = vld [vmem:[#allocation5 + $0x70] sm:$0xff]
    %v84 = vld [vmem:[#allocation5 + $0x78] sm:$0xff]
    %v85 = vld [vmem:[#allocation5 + $0x80] sm:$0xff]
    %v86 = vld [vmem:[#allocation5 + $0x88] sm:$0xff]
    %v87 = vld [vmem:[#allocation5 + $0x90] sm:$0xff]
    %v88 = vld [vmem:[#allocation5 + $0x98] sm:$0xff]
    %v89 = vld [vmem:[#allocation5 + $0xa0] sm:$0xff]
    %v90 = vld [vmem:[#allocation5 + $0xa8] sm:$0xff]
    %v91 = vld [vmem:[#allocation5 + $0xb0] sm:$0xff]
    %v92 = vld [vmem:[#allocation5 + $0xb8] sm:$0xff]
    %v93 = vld [vmem:[#allocation5 + $0xc0] sm:$0xff]
    %v94 = vld [vmem:[#allocation5 + $0xc8] sm:$0xff]
    %v95 = vld [vmem:[#allocation5 + $0xd0] sm:$0xff]
    %v96 = vld [vmem:[#allocation5 + $0xd8] sm:$0xff]
    %v97 = vld [vmem:[#allocation5 + $0xe0] sm:$0xff]
    %v98 = vld [vmem:[#allocation5 + $0xe8] sm:$0xff]
    %v99 = vld [vmem:[#allocation5 + $0xf0] sm:$0xff]
    %v100 = vld [vmem:[#allocation5 + $0xf8] sm:$0xff]
    %v133 = vunpack.c.l.b16 %v69
    %v134 = vunpack.c.h.b16 %v69
    %v135 = vunpack.c.l.b16 %v70
    %v136 = vunpack.c.h.b16 %v70
    %v137 = vunpack.c.l.b16 %v71
    %v138 = vunpack.c.h.b16 %v71
    %v139 = vunpack.c.l.b16 %v72
    %v140 = vunpack.c.h.b16 %v72
    %v141 = vunpack.c.l.b16 %v73
    %v142 = vunpack.c.h.b16 %v73
    %v143 = vunpack.c.l.b16 %v74
    %v144 = vunpack.c.h.b16 %v74
    %v145 = vunpack.c.l.b16 %v75
    %v146 = vunpack.c.h.b16 %v75
    %v147 = vunpack.c.l.b16 %v76
    %v148 = vunpack.c.h.b16 %v76
    %v149 = vunpack.c.l.b16 %v77
    %v150 = vunpack.c.h.b16 %v77
    %v151 = vunpack.c.l.b16 %v78
    %v152 = vunpack.c.h.b16 %v78
    %v153 = vunpack.c.l.b16 %v79
    %v154 = vunpack.c.h.b16 %v79
    %v155 = vunpack.c.l.b16 %v80
    %v156 = vunpack.c.h.b16 %v80
    %v157 = vunpack.c.l.b16 %v81
    %v158 = vunpack.c.h.b16 %v81
    %v159 = vunpack.c.l.b16 %v82
    %v160 = vunpack.c.h.b16 %v82
    %v161 = vunpack.c.l.b16 %v83
    %v162 = vunpack.c.h.b16 %v83
    %v163 = vunpack.c.l.b16 %v84
    %v164 = vunpack.c.h.b16 %v84
    %v165 = vunpack.c.l.b16 %v85
    %v166 = vunpack.c.h.b16 %v85
    %v167 = vunpack.c.l.b16 %v86
    %v168 = vunpack.c.h.b16 %v86
    %v169 = vunpack.c.l.b16 %v87
    %v170 = vunpack.c.h.b16 %v87
    %v171 = vunpack.c.l.b16 %v88
    %v172 = vunpack.c.h.b16 %v88
    %v173 = vunpack.c.l.b16 %v89
    %v174 = vunpack.c.h.b16 %v89
    %v175 = vunpack.c.l.b16 %v90
    %v176 = vunpack.c.h.b16 %v90
    %v177 = vunpack.c.l.b16 %v91
    %v178 = vunpack.c.h.b16 %v91
    %v179 = vunpack.c.l.b16 %v92
    %v180 = vunpack.c.h.b16 %v92
    %v181 = vunpack.c.l.b16 %v93
    %v182 = vunpack.c.h.b16 %v93
    %v183 = vunpack.c.l.b16 %v94
    %v184 = vunpack.c.h.b16 %v94
    %v185 = vunpack.c.l.b16 %v95
    %v186 = vunpack.c.h.b16 %v95
    %v187 = vunpack.c.l.b16 %v96
    %v188 = vunpack.c.h.b16 %v96
    %v189 = vunpack.c.l.b16 %v97
    %v190 = vunpack.c.h.b16 %v97
    %v191 = vunpack.c.l.b16 %v98
    %v192 = vunpack.c.h.b16 %v98
    %v193 = vunpack.c.l.b16 %v99
    %v194 = vunpack.c.h.b16 %v99
    %v195 = vunpack.c.l.b16 %v100
    %v196 = vunpack.c.h.b16 %v100
    %v197 = vpack.c.b16 %v137, %v133
    %v198 = vpack.c.b16 %v138, %v134
    %v199 = vpack.c.b16 %v139, %v135
    %v200 = vpack.c.b16 %v140, %v136
    %v201 = vpack.c.b16 %v145, %v141
    %v202 = vpack.c.b16 %v146, %v142
    %v203 = vpack.c.b16 %v147, %v143
    %v204 = vpack.c.b16 %v148, %v144
    %v205 = vpack.c.b16 %v153, %v149
    %v206 = vpack.c.b16 %v154, %v150
    %v207 = vpack.c.b16 %v155, %v151
    %v208 = vpack.c.b16 %v156, %v152
    %v209 = vpack.c.b16 %v161, %v157
    %v210 = vpack.c.b16 %v162, %v158
    %v211 = vpack.c.b16 %v163, %v159
    %v212 = vpack.c.b16 %v164, %v160
    %v213 = vpack.c.b16 %v169, %v165
    %v214 = vpack.c.b16 %v170, %v166
    %v215 = vpack.c.b16 %v171, %v167
    %v216 = vpack.c.b16 %v172, %v168
    %v217 = vpack.c.b16 %v177, %v173
    %v218 = vpack.c.b16 %v178, %v174
    %v219 = vpack.c.b16 %v179, %v175
    %v220 = vpack.c.b16 %v180, %v176
    %v221 = vpack.c.b16 %v185, %v181
    %v222 = vpack.c.b16 %v186, %v182
    %v223 = vpack.c.b16 %v187, %v183
    %v224 = vpack.c.b16 %v188, %v184
    %v225 = vpack.c.b16 %v193, %v189
    %v226 = vpack.c.b16 %v194, %v190
    %v227 = vpack.c.b16 %v195, %v191
    %v228 = vpack.c.b16 %v196, %v192
    %261 = vmatprep.subr.bf16.mxu0 %v226
    %262 = vmatpush1.bf16.msra.mxu0 %v225
    %263 = vmatprep.subr.bf16.mxu0 %v222
    %264 = vmatpush1.bf16.msra.mxu0 %v221
    %265 = vmatprep.subr.bf16.mxu0 %v218
    %266 = vmatpush1.bf16.msra.mxu0 %v217
    %267 = vmatprep.subr.bf16.mxu0 %v214
    %268 = vmatpush1.bf16.msra.mxu0 %v213
    %269 = vmatprep.subr.bf16.mxu0 %v210
    %270 = vmatpush1.bf16.msra.mxu0 %v209
    %271 = vmatprep.subr.bf16.mxu0 %v206
    %272 = vmatpush1.bf16.msra.mxu0 %v205
    %273 = vmatprep.subr.bf16.mxu0 %v202
    %274 = vmatpush1.bf16.msra.mxu0 %v201
    %275 = vmatprep.subr.bf16.mxu0 %v198
    %276 = vmatpush1.bf16.msra.mxu0 %v197
    %277 = vmatprep.subr.bf16.mxu0 0
    %278 = vmatpush2.bf16.msra.mxu0 0
    %279 = vmatprep.subr.bf16.mxu0 0
    %280 = vmatpush2.bf16.msra.mxu0 0
    %281 = vmatprep.subr.bf16.mxu0 0
    %282 = vmatpush2.bf16.msra.mxu0 0
    %283 = vmatprep.subr.bf16.mxu0 0
    %284 = vmatpush2.bf16.msra.mxu0 0
    %285 = vmatprep.subr.bf16.mxu0 0
    %286 = vmatpush2.bf16.msra.mxu0 0
    %287 = vmatprep.subr.bf16.mxu0 0
    %288 = vmatpush2.bf16.msra.mxu0 0
    %289 = vmatprep.subr.bf16.mxu0 0
    %290 = vmatpush2.bf16.msra.mxu0 0
    %291 = vmatprep.subr.bf16.mxu0 0
    %292 = vmatpush2.bf16.msra.mxu0 0
    %293 = vmatprep.mubr.bf16.mxu0 0
    %294 = vmatmul.mubr.bf16.gmra.mxu0 %v68
    %v295 = vpop.f32.mrf.mxu0
    %v296 = vadd.f32 0.0, %v295
    %v297 = vpop.f32.mrf.mxu0
    %v298 = vadd.f32 0.0, %v297
    %v299 = vpop.f32.mrf.mxu0
    %v300 = vpop.f32.mrf.mxu0
    %301 = vdwg.mxu0
    %302 = vmatprep.subr.bf16.mxu0 %v228
    %303 = vmatpush1.bf16.msra.mxu0 %v227
    %304 = vmatprep.subr.bf16.mxu0 %v224
    %305 = vmatpush1.bf16.msra.mxu0 %v223
    %306 = vmatprep.subr.bf16.mxu0 %v220
    %307 = vmatpush1.bf16.msra.mxu0 %v219
    %308 = vmatprep.subr.bf16.mxu0 %v216
    %309 = vmatpush1.bf16.msra.mxu0 %v215
    %310 = vmatprep.subr.bf16.mxu0 %v212
    %311 = vmatpush1.bf16.msra.mxu0 %v211
    %312 = vmatprep.subr.bf16.mxu0 %v208
    %313 = vmatpush1.bf16.msra.mxu0 %v207
    %314 = vmatprep.subr.bf16.mxu0 %v204
    %315 = vmatpush1.bf16.msra.mxu0 %v203
    %316 = vmatprep.subr.bf16.mxu0 %v200
    %317 = vmatpush1.bf16.msra.mxu0 %v199
    %318 = vmatprep.subr.bf16.mxu0 0
    %319 = vmatpush2.bf16.msra.mxu0 0
    %320 = vmatprep.subr.bf16.mxu0 0
    %321 = vmatpush2.bf16.msra.mxu0 0
    %322 = vmatprep.subr.bf16.mxu0 0
    %323 = vmatpush2.bf16.msra.mxu0 0
    %324 = vmatprep.subr.bf16.mxu0 0
    %325 = vmatpush2.bf16.msra.mxu0 0
    %326 = vmatprep.subr.bf16.mxu0 0
    %327 = vmatpush2.bf16.msra.mxu0 0
    %328 = vmatprep.subr.bf16.mxu0 0
    %329 = vmatpush2.bf16.msra.mxu0 0
    %330 = vmatprep.subr.bf16.mxu0 0
    %331 = vmatpush2.bf16.msra.mxu0 0
    %332 = vmatprep.subr.bf16.mxu0 0
    %333 = vmatpush2.bf16.msra.mxu0 0
    %334 = vmatprep.mubr.bf16.mxu0 0
    %335 = vmatmul.mubr.bf16.gmra.mxu0 %v68
    %v336 = vpop.f32.mrf.mxu0
    %v337 = vadd.f32 0.0, %v336
    %v338 = vpop.f32.mrf.mxu0
    %v339 = vadd.f32 0.0, %v338
    %v340 = vpop.f32.mrf.mxu0
    %v341 = vpop.f32.mrf.mxu0
    %342 = vdwg.mxu0
    %v343 = vld [vmem:[%s2] sm:$0x3]
    %v345 = vlaneseq
    %v346 = vshrl.u32 %v345, 7
    %v347 = vsub.s32 0, %v346
    %v348 = vrot.slane %v343, %v347
    %v349 = vlaneseq
    %v350 = vshrl.u32 %v349, 7
    %v351 = vsub.s32 1, %v350
    %v352 = vrot.slane %v343, %v351
    %v355 = vadd.f32 %v296, %v348
    %v356 = vadd.f32 %v298, %v352
    %v357 = vmax.f32 %v355, 0.0
    %v358 = vmax.f32 %v356, 0.0
    %v359 = vpack.c.bf16 %v357, %v357
    %v360 = vpack.c.bf16 %v358, %v358
    %v361 = vld [vmem:[#allocation7] sm:$0xff]
    %v362 = vld [vmem:[#allocation7 + $0x8] sm:$0xff]
    %v363 = vld [vmem:[#allocation7 + $0x10] sm:$0xff]
    %v364 = vld [vmem:[#allocation7 + $0x18] sm:$0xff]
    %v365 = vld [vmem:[#allocation7 + $0x20] sm:$0xff]
    %v366 = vld [vmem:[#allocation7 + $0x28] sm:$0xff]
    %v367 = vld [vmem:[#allocation7 + $0x30] sm:$0xff]
    %v368 = vld [vmem:[#allocation7 + $0x38] sm:$0xff]
    %v369 = vld [vmem:[#allocation7 + $0x40] sm:$0xff]
    %v370 = vld [vmem:[#allocation7 + $0x48] sm:$0xff]
    %v371 = vld [vmem:[#allocation7 + $0x50] sm:$0xff]
    %v372 = vld [vmem:[#allocation7 + $0x58] sm:$0xff]
    %v373 = vld [vmem:[#allocation7 + $0x60] sm:$0xff]
    %v374 = vld [vmem:[#allocation7 + $0x68] sm:$0xff]
    %v375 = vld [vmem:[#allocation7 + $0x70] sm:$0xff]
    %v376 = vld [vmem:[#allocation7 + $0x78] sm:$0xff]
    %v377 = vld [vmem:[#allocation7 + $0x80] sm:$0xff]
    %v378 = vld [vmem:[#allocation7 + $0x88] sm:$0xff]
    %v379 = vld [vmem:[#allocation7 + $0x90] sm:$0xff]
    %v380 = vld [vmem:[#allocation7 + $0x98] sm:$0xff]
    %v381 = vld [vmem:[#allocation7 + $0xa0] sm:$0xff]
    %v382 = vld [vmem:[#allocation7 + $0xa8] sm:$0xff]
    %v383 = vld [vmem:[#allocation7 + $0xb0] sm:$0xff]
    %v384 = vld [vmem:[#allocation7 + $0xb8] sm:$0xff]
    %v385 = vld [vmem:[#allocation7 + $0xc0] sm:$0xff]
    %v386 = vld [vmem:[#allocation7 + $0xc8] sm:$0xff]
    %v387 = vld [vmem:[#allocation7 + $0xd0] sm:$0xff]
    %v388 = vld [vmem:[#allocation7 + $0xd8] sm:$0xff]
    %v389 = vld [vmem:[#allocation7 + $0xe0] sm:$0xff]
    %v390 = vld [vmem:[#allocation7 + $0xe8] sm:$0xff]
    %v391 = vld [vmem:[#allocation7 + $0xf0] sm:$0xff]
    %v392 = vld [vmem:[#allocation7 + $0xf8] sm:$0xff]
    %v425 = vunpack.c.l.b16 %v361
    %v426 = vunpack.c.h.b16 %v361
    %v427 = vunpack.c.l.b16 %v362
    %v428 = vunpack.c.h.b16 %v362
    %v429 = vunpack.c.l.b16 %v363
    %v430 = vunpack.c.h.b16 %v363
    %v431 = vunpack.c.l.b16 %v364
    %v432 = vunpack.c.h.b16 %v364
    %v433 = vunpack.c.l.b16 %v365
    %v434 = vunpack.c.h.b16 %v365
    %v435 = vunpack.c.l.b16 %v366
    %v436 = vunpack.c.h.b16 %v366
    %v437 = vunpack.c.l.b16 %v367
    %v438 = vunpack.c.h.b16 %v367
    %v439 = vunpack.c.l.b16 %v368
    %v440 = vunpack.c.h.b16 %v368
    %v441 = vunpack.c.l.b16 %v369
    %v442 = vunpack.c.h.b16 %v369
    %v443 = vunpack.c.l.b16 %v370
    %v444 = vunpack.c.h.b16 %v370
    %v445 = vunpack.c.l.b16 %v371
    %v446 = vunpack.c.h.b16 %v371
    %v447 = vunpack.c.l.b16 %v372
    %v448 = vunpack.c.h.b16 %v372
    %v449 = vunpack.c.l.b16 %v373
    %v450 = vunpack.c.h.b16 %v373
    %v451 = vunpack.c.l.b16 %v374
    %v452 = vunpack.c.h.b16 %v374
    %v453 = vunpack.c.l.b16 %v375
    %v454 = vunpack.c.h.b16 %v375
    %v455 = vunpack.c.l.b16 %v376
    %v456 = vunpack.c.h.b16 %v376
    %v457 = vunpack.c.l.b16 %v377
    %v458 = vunpack.c.h.b16 %v377
    %v459 = vunpack.c.l.b16 %v378
    %v460 = vunpack.c.h.b16 %v378
    %v461 = vunpack.c.l.b16 %v379
    %v462 = vunpack.c.h.b16 %v379
    %v463 = vunpack.c.l.b16 %v380
    %v464 = vunpack.c.h.b16 %v380
    %v465 = vunpack.c.l.b16 %v381
    %v466 = vunpack.c.h.b16 %v381
    %v467 = vunpack.c.l.b16 %v382
    %v468 = vunpack.c.h.b16 %v382
    %v469 = vunpack.c.l.b16 %v383
    %v470 = vunpack.c.h.b16 %v383
    %v471 = vunpack.c.l.b16 %v384
    %v472 = vunpack.c.h.b16 %v384
    %v473 = vunpack.c.l.b16 %v385
    %v474 = vunpack.c.h.b16 %v385
    %v475 = vunpack.c.l.b16 %v386
    %v476 = vunpack.c.h.b16 %v386
    %v477 = vunpack.c.l.b16 %v387
    %v478 = vunpack.c.h.b16 %v387
    %v479 = vunpack.c.l.b16 %v388
    %v480 = vunpack.c.h.b16 %v388
    %v481 = vunpack.c.l.b16 %v389
    %v482 = vunpack.c.h.b16 %v389
    %v483 = vunpack.c.l.b16 %v390
    %v484 = vunpack.c.h.b16 %v390
    %v485 = vunpack.c.l.b16 %v391
    %v486 = vunpack.c.h.b16 %v391
    %v487 = vunpack.c.l.b16 %v392
    %v488 = vunpack.c.h.b16 %v392
    %v489 = vpack.c.b16 %v427, %v425
    %v490 = vpack.c.b16 %v428, %v426
    %v491 = vpack.c.b16 %v431, %v429
    %v492 = vpack.c.b16 %v432, %v430
    %v493 = vpack.c.b16 %v435, %v433
    %v494 = vpack.c.b16 %v436, %v434
    %v495 = vpack.c.b16 %v439, %v437
    %v496 = vpack.c.b16 %v440, %v438
    %v497 = vpack.c.b16 %v443, %v441
    %v498 = vpack.c.b16 %v444, %v442
    %v499 = vpack.c.b16 %v447, %v445
    %v500 = vpack.c.b16 %v448, %v446
    %v501 = vpack.c.b16 %v451, %v449
    %v502 = vpack.c.b16 %v452, %v450
    %v503 = vpack.c.b16 %v455, %v453
    %v504 = vpack.c.b16 %v456, %v454
    %v505 = vpack.c.b16 %v459, %v457
    %v506 = vpack.c.b16 %v460, %v458
    %v507 = vpack.c.b16 %v463, %v461
    %v508 = vpack.c.b16 %v464, %v462
    %v509 = vpack.c.b16 %v467, %v465
    %v510 = vpack.c.b16 %v468, %v466
    %v511 = vpack.c.b16 %v471, %v469
    %v512 = vpack.c.b16 %v472, %v470
    %v513 = vpack.c.b16 %v475, %v473
    %v514 = vpack.c.b16 %v476, %v474
    %v515 = vpack.c.b16 %v479, %v477
    %v516 = vpack.c.b16 %v480, %v478
    %v517 = vpack.c.b16 %v483, %v481
    %v518 = vpack.c.b16 %v484, %v482
    %v519 = vpack.c.b16 %v487, %v485
    %v520 = vpack.c.b16 %v488, %v486
    %553 = vmatprep.subr.bf16.mxu0 %v504
    %554 = vmatpush1.bf16.msra.mxu0 %v503
    %555 = vmatprep.subr.bf16.mxu0 %v502
    %556 = vmatpush1.bf16.msra.mxu0 %v501
    %557 = vmatprep.subr.bf16.mxu0 %v500
    %558 = vmatpush1.bf16.msra.mxu0 %v499
    %559 = vmatprep.subr.bf16.mxu0 %v498
    %560 = vmatpush1.bf16.msra.mxu0 %v497
    %561 = vmatprep.subr.bf16.mxu0 %v496
    %562 = vmatpush1.bf16.msra.mxu0 %v495
    %563 = vmatprep.subr.bf16.mxu0 %v494
    %564 = vmatpush1.bf16.msra.mxu0 %v493
    %565 = vmatprep.subr.bf16.mxu0 %v492
    %566 = vmatpush1.bf16.msra.mxu0 %v491
    %567 = vmatprep.subr.bf16.mxu0 %v490
    %568 = vmatpush1.bf16.msra.mxu0 %v489
    %569 = vmatprep.subr.bf16.mxu0 %v520
    %570 = vmatpush2.bf16.msra.mxu0 %v519
    %571 = vmatprep.subr.bf16.mxu0 %v518
    %572 = vmatpush2.bf16.msra.mxu0 %v517
    %573 = vmatprep.subr.bf16.mxu0 %v516
    %574 = vmatpush2.bf16.msra.mxu0 %v515
    %575 = vmatprep.subr.bf16.mxu0 %v514
    %576 = vmatpush2.bf16.msra.mxu0 %v513
    %577 = vmatprep.subr.bf16.mxu0 %v512
    %578 = vmatpush2.bf16.msra.mxu0 %v511
    %579 = vmatprep.subr.bf16.mxu0 %v510
    %580 = vmatpush2.bf16.msra.mxu0 %v509
    %581 = vmatprep.subr.bf16.mxu0 %v508
    %582 = vmatpush2.bf16.msra.mxu0 %v507
    %583 = vmatprep.subr.bf16.mxu0 %v506
    %584 = vmatpush2.bf16.msra.mxu0 %v505
    %585 = vmatprep.mubr.bf16.mxu0 %v360
    %586 = vmatmul.mubr.bf16.gmra.mxu0 %v359
    %v587 = vpop.f32.mrf.mxu0
    %v588 = vadd.f32 %v337, %v587
    %v589 = vpop.f32.mrf.mxu0
    %v590 = vadd.f32 %v339, %v589
    %v591 = vpop.f32.mrf.mxu0
    %v592 = vpop.f32.mrf.mxu0
    %593 = vdwg.mxu0
    %v594 = vld [vmem:[%s4] sm:$0x3]
    %v596 = vlaneseq
    %v597 = vshrl.u32 %v596, 7
    %v598 = vsub.s32 0, %v597
    %v599 = vrot.slane %v594, %v598
    %v600 = vlaneseq
    %v601 = vshrl.u32 %v600, 7
    %v602 = vsub.s32 1, %v601
    %v603 = vrot.slane %v594, %v602
    %v606 = vadd.f32 %v588, %v599
    %v607 = vadd.f32 %v590, %v603
    %v608 = vmax.f32 %v606, 0.0
    %v609 = vmax.f32 %v607, 0.0
    %v610 = vld [vmem:[%s5] sm:$0x3]
    %v612 = vlaneseq
    %v613 = vshrl.u32 %v612, 7
    %v614 = vsub.s32 0, %v613
    %v615 = vrot.slane %v610, %v614
    %v616 = vlaneseq
    %v617 = vshrl.u32 %v616, 7
    %v618 = vsub.s32 1, %v617
    %v619 = vrot.slane %v610, %v618
    %v622 = vmul.f32 %v608, %v615
    %v623 = vmul.f32 %v609, %v619
    %v624 = vadd.f32 %v622, %v623
    %625 = vadd.xlane.f32.xlu0 %v624
    %v626 = vpop.xlane.xlu0 %625
    %v627 = vld [vmem:[#allocation2] sm:$0x1]
    %v629 = vlaneseq
    %v630 = vshrl.u32 %v629, 7
    %v631 = vsub.s32 0, %v630
    %v632 = vrot.slane %v627, %v631
    %v634 = vadd.f32 %v626, %v632
    %vm635 = vcmask 7168
    %636 = vst.msk [vmem:[%s7] sm:$0xff] %vm635, %v634
    // Predicated region
    $region42: #{tpu_custom_call.1} parent=1 // pred_check
      _
    $region43: #{tpu_custom_call.1} parent=1 // pred_check_branch
      %638 = sbr.rel (0) target = $region45
    $region44: #{tpu_custom_call.1} parent=1 // pred_region
      _
    $region45: #{tpu_custom_call.1} parent=1 // pred_fallthru
      _
    // Predicated region
    $region46: #{tpu_custom_call.1} parent=1 // pred_check
      _
    $region47: #{tpu_custom_call.1} parent=1 // pred_check_branch
      %640 = sbr.rel (0) target = $region49
    $region48: #{tpu_custom_call.1} parent=1 // pred_region
      _
    $region49: #{tpu_custom_call.1} parent=1 // pred_fallthru
      _
    %641 = vsyncpa [#allocation4], 1
    %642 = vsyncpa [#allocation6], 1

</llo_original>
